<compile_context>
chip_gen: v5e
topology: v5e:2x2
jax: 0.10.0
libtpu: 0.0.40
codegen_flags: <defaults>
</compile_context>

<pallas_src>
import functools

import jax
import jax.numpy as jnp
from jax.experimental import pallas as pl
from jax.experimental.pallas import tpu as pltpu

_LANE = 128      # lane width: all feature dims padded to a multiple of this
_SUBLANE = 8     # sublane width: batch tiles are multiples of this


def _round_up(x, m):
    return (x + m - 1) // m * m


def _cdiv(a, b):
    return -(-a // b)


def _vmem_capacity_bytes():
    """Physical VMEM of the local chip; conservative fallback if unqueryable."""
    try:
        return int(pltpu.get_tpu_info().vmem_capacity_bytes)
    except Exception:
        return 64 * 1024 * 1024   # v7x per-TensorCore VMEM (smallest of v5e/v6e/v7x)


def _choose_batch_tile(b8, max_rows):
    """Pick a batch tile (multiple of 8) with small padding waste.

    Also splits a single-step grid into two steps when the batch allows it so
    dimension_semantics=("parallel",) actually feeds both v7x TensorCores.
    """
    cap = max(_SUBLANE, min(max_rows, b8))
    tb = _SUBLANE
    t = _SUBLANE
    while t <= cap:
        waste = _round_up(b8, t) - b8
        if waste * 16 <= b8:           # <= ~6.25% padded rows
            tb = t
        t *= 2
    b_pad = _round_up(b8, tb)
    if b_pad == tb and b8 >= 2 * _SUBLANE:
        tb = _round_up(_cdiv(b8, 2), _SUBLANE)
        b_pad = 2 * tb
    return tb, b_pad


def _fused_dae_kernel(n_layers, *refs):
    """refs = (x_ref, w0, b0, w1, b1, ..., w{L-1}, b{L-1}, o_ref)."""
    x_ref, o_ref = refs[0], refs[-1]
    params = refs[1:-1]

    h = x_ref[...]                          # (TB, Kp) bf16
    out = None
    for i in range(n_layers):               # statically unrolled layer chain
        w = params[2 * i][...]               # (Kp_i, Np_i) bf16, VMEM-resident
        b = params[2 * i + 1][...]           # (1, Np_i)   f32
        acc = jnp.dot(h, w, preferred_element_type=jnp.float32) + b
        out = jnp.maximum(acc, 0.0)          # ReLU in f32 (module ends with ReLU)
        h = out.astype(w.dtype)              # bf16 operand for the next MXU pass
    o_ref[...] = out.astype(o_ref.dtype)


def make_dae_forward(params, compute_dtype=jnp.bfloat16, out_dtype=jnp.bfloat16,
                     max_tile_rows=512, single_buffer_params=True):
    """Build a jitted forward fn from a list of (w:(K,N), b:(1,N)) f32 params."""
    if not params:
        raise ValueError("DAE needs at least one (weight, bias) layer")

    dims = [params[0][0].shape[0]] + [w.shape[1] for w, _ in params]
    pdims = [max(_LANE, _round_up(d, _LANE)) for d in dims]      # lane-dense dims

    # Zero-pad weights/biases to lane-dense shapes once, cast weights to bf16.
    padded = []
    for li, (w, b) in enumerate(params):
        kp, np_ = pdims[li], pdims[li + 1]
        wp = jnp.zeros((kp, np_), compute_dtype)
        wp = wp.at[: w.shape[0], : w.shape[1]].set(w.astype(compute_dtype))
        bp = jnp.zeros((1, np_), jnp.float32)
        bp = bp.at[:, : b.shape[1]].set(b.astype(jnp.float32))
        padded.append((wp, bp))

    n_layers = len(params)
    kp0, np_last = pdims[0], pdims[-1]
    out_features = dims[-1]
    kernel = functools.partial(_fused_dae_kernel, n_layers)

    csize = jnp.dtype(compute_dtype).itemsize
    osize = jnp.dtype(out_dtype).itemsize
    param_bytes = sum(int(wp.size) * wp.dtype.itemsize + int(bp.size) * bp.dtype.itemsize
                      for wp, bp in padded)
    param_buf_count = 1 if single_buffer_params else 2
    # Per-batch-row VMEM: double-buffered input/output tiles + slack for the
    # compiler-managed f32 intermediates inside the unrolled layer chain.
    per_row_bytes = 2 * kp0 * csize + 2 * np_last * osize + 3 * max(pdims) * 4
    vmem_cap = _vmem_capacity_bytes()
    layer_macs = sum(kp * np_ for kp, np_ in zip(pdims[:-1], pdims[1:]))

    def _param_spec(shape):
        if single_buffer_params:
            # Grid-invariant (index_map == (0,0)): one buffer is enough;
            # double-buffering it would only burn VMEM.
            return pl.BlockSpec(shape, lambda i: (0, 0),
                                pipeline_mode=pl.Buffered(1))
        return pl.BlockSpec(shape, lambda i: (0, 0))

    def _forward(x):
        B, K = x.shape
        b8 = _round_up(B, _SUBLANE)

        # VMEM budget -> cap on the batch tile (keeps v7x's 64 MiB happy).
        budget = int(0.75 * vmem_cap)
        avail = budget - param_buf_count * param_bytes
        if avail < per_row_bytes * _SUBLANE:
            # TODO(synk): resident weights (nearly) exhaust VMEM on this chip;
            # stream them instead (grid axis over layers / K-chunks, or
            # pltpu.emit_pipeline with weights left in pl.ANY/HBM).
            avail = per_row_bytes * _SUBLANE
        tb_vmem_cap = max(_SUBLANE, avail // per_row_bytes // _SUBLANE * _SUBLANE)
        tb, b_pad = _choose_batch_tile(b8, min(max_tile_rows, tb_vmem_cap))

        # Pad/cast input only when actually necessary (avoids an extra HBM copy).
        if (B, K) == (b_pad, kp0):
            xp = x.astype(compute_dtype)
        else:
            xp = jnp.pad(x.astype(compute_dtype),
                         ((0, b_pad - B), (0, kp0 - K)))

        in_specs = [pl.BlockSpec((tb, kp0), lambda i: (i, 0))]
        flat_args = [xp]
        for wp, bp in padded:
            in_specs.append(_param_spec(wp.shape))
            in_specs.append(_param_spec(bp.shape))
            flat_args += [wp, bp]

        vmem_limit = param_buf_count * param_bytes + per_row_bytes * tb + (2 << 20)
        vmem_limit = int(min(max(vmem_limit, 32 << 20), int(0.9 * vmem_cap), 128 << 20))

        cost = pl.CostEstimate(
            flops=2 * b_pad * layer_macs,
            transcendentals=0,
            bytes_accessed=param_bytes + b_pad * kp0 * csize + b_pad * np_last * osize,
        )

        out = pl.pallas_call(
            kernel,
            out_shape=jax.ShapeDtypeStruct((b_pad, np_last), out_dtype),
            grid=(b_pad // tb,),
            in_specs=in_specs,
            out_specs=pl.BlockSpec((tb, np_last), lambda i: (i, 0)),
            compiler_params=pltpu.CompilerParams(
                dimension_semantics=("parallel",),
                vmem_limit_bytes=vmem_limit),
            cost_estimate=cost,
        )(*flat_args)
        return out[:B, :out_features]

    return jax.jit(_forward)


def init_dae_params(key, input_size, encoder_sizes, decoder_sizes, output_size,
                    dtype=jnp.float32):
    """Deterministic synthetic params matching DAE.__init__ layer shapes.

    Layer widths: input -> encoder_sizes... -> decoder_sizes[1:]... -> output
    (the PyTorch module implicitly assumes decoder_sizes[0]==encoder_sizes[-1]).
    Every layer (including the final one) is Linear followed by ReLU.
    """
    dims = [input_size] + list(encoder_sizes) + list(decoder_sizes[1:]) + [output_size]
    params = []
    for i in range(len(dims) - 1):
        key, kw, kb = jax.random.split(key, 3)
        scale = 1.0 / jnp.sqrt(jnp.asarray(dims[i], dtype))
        w = jax.random.uniform(kw, (dims[i], dims[i + 1]), dtype, -scale, scale)
        b = jax.random.uniform(kb, (1, dims[i + 1]), dtype, -scale, scale)
        params.append((w, b))
    return params


def dae_forward_ref(x, params):
    """Plain-JAX f32 reference."""
    for w, b in params:
        x = jnp.maximum(x @ w + b, 0.0)
    return x


if __name__ == "__main__":
    # Small shapes consistent with the module:
    #   input_size=32, encoder_sizes=[64,32], decoder_sizes=[32,64],
    #   output_size=16, batch=8.
    batch = 8
    input_size = 32
    encoder_sizes = [64, 32]
    decoder_sizes = [32, 64]   # decoder_sizes[0] == encoder_sizes[-1]
    output_size = 16

    key = jax.random.PRNGKey(0)
    key, kx = jax.random.split(key)
    x = jax.random.normal(kx, (batch, input_size), jnp.float32)

    params = init_dae_params(key, input_size, encoder_sizes, decoder_sizes,
                             output_size)

    dae_forward = make_dae_forward(params)
    try:
        out = jax.block_until_ready(dae_forward(x))
    except Exception:
        # Fallback for jax versions where pipeline_mode=pl.Buffered is not
        # accepted on pallas_call BlockSpecs: default (double-buffered) params.
        dae_forward = make_dae_forward(params, single_buffer_params=False)
        out = jax.block_until_ready(dae_forward(x))

    ref = dae_forward_ref(x, params)
    assert out.shape == (batch, output_size)
    # Loose tolerance: bf16 MXU operands + bf16 output (f32 accumulation).
    assert jnp.allclose(out.astype(jnp.float32), ref, atol=5e-2, rtol=5e-2), \
        "mismatch vs reference"

    print("KERNEL_OK")
</pallas_src>

<mosaic_0001>
module attributes {stable_mosaic.version = 11 : i64} {
  func.func @_fused_dae_kernel(%arg0: i32, %arg1: memref<8x128xbf16, #tpu.memory_space<vmem>>, %arg2: memref<128x128xbf16, #tpu.memory_space<vmem>>, %arg3: memref<1x128xf32, #tpu.memory_space<vmem>>, %arg4: memref<128x128xbf16, #tpu.memory_space<vmem>>, %arg5: memref<1x128xf32, #tpu.memory_space<vmem>>, %arg6: memref<128x128xbf16, #tpu.memory_space<vmem>>, %arg7: memref<1x128xf32, #tpu.memory_space<vmem>>, %arg8: memref<128x128xbf16, #tpu.memory_space<vmem>>, %arg9: memref<1x128xf32, #tpu.memory_space<vmem>>, %arg10: memref<8x128xbf16, #tpu.memory_space<vmem>>) attributes {dimension_semantics = [#tpu.dimension_semantics<parallel>], iteration_bounds = array<i64: 1>, scalar_prefetch = 0 : i64, scratch_operands = 0 : i64, tpu.core_type = #tpu.core_type<tc>, window_params = [{transform_indices = @transform_0, window_bounds = array<i64: 8, 128>}, {pipeline_mode = #tpu.pipeline_mode<synchronous>, transform_indices = @transform_1, window_bounds = array<i64: 128, 128>}, {pipeline_mode = #tpu.pipeline_mode<synchronous>, transform_indices = @transform_2, window_bounds = array<i64: 1, 128>}, {pipeline_mode = #tpu.pipeline_mode<synchronous>, transform_indices = @transform_3, window_bounds = array<i64: 128, 128>}, {pipeline_mode = #tpu.pipeline_mode<synchronous>, transform_indices = @transform_4, window_bounds = array<i64: 1, 128>}, {pipeline_mode = #tpu.pipeline_mode<synchronous>, transform_indices = @transform_5, window_bounds = array<i64: 128, 128>}, {pipeline_mode = #tpu.pipeline_mode<synchronous>, transform_indices = @transform_6, window_bounds = array<i64: 1, 128>}, {pipeline_mode = #tpu.pipeline_mode<synchronous>, transform_indices = @transform_7, window_bounds = array<i64: 128, 128>}, {pipeline_mode = #tpu.pipeline_mode<synchronous>, transform_indices = @transform_8, window_bounds = array<i64: 1, 128>}, {transform_indices = @transform_9, window_bounds = array<i64: 8, 128>}]} {
    %c0 = arith.constant 0 : index
    %c0_0 = arith.constant 0 : index
    %0 = vector.load %arg1[%c0, %c0_0] : memref<8x128xbf16, #tpu.memory_space<vmem>>, vector<8x128xbf16>
    %c0_1 = arith.constant 0 : index
    %c0_2 = arith.constant 0 : index
    %1 = vector.load %arg2[%c0_1, %c0_2] : memref<128x128xbf16, #tpu.memory_space<vmem>>, vector<128x128xbf16>
    %c0_3 = arith.constant 0 : index
    %c0_4 = arith.constant 0 : index
    %2 = vector.load %arg3[%c0_3, %c0_4] : memref<1x128xf32, #tpu.memory_space<vmem>>, vector<1x128xf32>
    %cst = arith.constant dense<0.000000e+00> : vector<8x128xf32>
    %3 = tpu.matmul %0, %1, %cst {dimension_numbers = #tpu.dot_dimension_numbers<[1], [0], [0], [1], [0, 0, 1, 1], [], []>} : vector<8x128xbf16>, vector<128x128xbf16>, vector<8x128xf32> -> vector<8x128xf32>
    %4 = vector.broadcast %2 : vector<1x128xf32> to vector<8x128xf32>
    %5 = arith.addf %3, %4 : vector<8x128xf32>
    %cst_5 = arith.constant 0.000000e+00 : f32
    %6 = vector.broadcast %cst_5 : f32 to vector<8x128xf32>
    %7 = arith.maximumf %5, %6 : vector<8x128xf32>
    %8 = arith.truncf %7 : vector<8x128xf32> to vector<8x128xbf16>
    %c0_6 = arith.constant 0 : index
    %c0_7 = arith.constant 0 : index
    %9 = vector.load %arg4[%c0_6, %c0_7] : memref<128x128xbf16, #tpu.memory_space<vmem>>, vector<128x128xbf16>
    %c0_8 = arith.constant 0 : index
    %c0_9 = arith.constant 0 : index
    %10 = vector.load %arg5[%c0_8, %c0_9] : memref<1x128xf32, #tpu.memory_space<vmem>>, vector<1x128xf32>
    %cst_10 = arith.constant dense<0.000000e+00> : vector<8x128xf32>
    %11 = tpu.matmul %8, %9, %cst_10 {dimension_numbers = #tpu.dot_dimension_numbers<[1], [0], [0], [1], [0, 0, 1, 1], [], []>} : vector<8x128xbf16>, vector<128x128xbf16>, vector<8x128xf32> -> vector<8x128xf32>
    %12 = vector.broadcast %10 : vector<1x128xf32> to vector<8x128xf32>
    %13 = arith.addf %11, %12 : vector<8x128xf32>
    %cst_11 = arith.constant 0.000000e+00 : f32
    %14 = vector.broadcast %cst_11 : f32 to vector<8x128xf32>
    %15 = arith.maximumf %13, %14 : vector<8x128xf32>
    %16 = arith.truncf %15 : vector<8x128xf32> to vector<8x128xbf16>
    %c0_12 = arith.constant 0 : index
    %c0_13 = arith.constant 0 : index
    %17 = vector.load %arg6[%c0_12, %c0_13] : memref<128x128xbf16, #tpu.memory_space<vmem>>, vector<128x128xbf16>
    %c0_14 = arith.constant 0 : index
    %c0_15 = arith.constant 0 : index
    %18 = vector.load %arg7[%c0_14, %c0_15] : memref<1x128xf32, #tpu.memory_space<vmem>>, vector<1x128xf32>
    %cst_16 = arith.constant dense<0.000000e+00> : vector<8x128xf32>
    %19 = tpu.matmul %16, %17, %cst_16 {dimension_numbers = #tpu.dot_dimension_numbers<[1], [0], [0], [1], [0, 0, 1, 1], [], []>} : vector<8x128xbf16>, vector<128x128xbf16>, vector<8x128xf32> -> vector<8x128xf32>
    %20 = vector.broadcast %18 : vector<1x128xf32> to vector<8x128xf32>
    %21 = arith.addf %19, %20 : vector<8x128xf32>
    %cst_17 = arith.constant 0.000000e+00 : f32
    %22 = vector.broadcast %cst_17 : f32 to vector<8x128xf32>
    %23 = arith.maximumf %21, %22 : vector<8x128xf32>
    %24 = arith.truncf %23 : vector<8x128xf32> to vector<8x128xbf16>
    %c0_18 = arith.constant 0 : index
    %c0_19 = arith.constant 0 : index
    %25 = vector.load %arg8[%c0_18, %c0_19] : memref<128x128xbf16, #tpu.memory_space<vmem>>, vector<128x128xbf16>
    %c0_20 = arith.constant 0 : index
    %c0_21 = arith.constant 0 : index
    %26 = vector.load %arg9[%c0_20, %c0_21] : memref<1x128xf32, #tpu.memory_space<vmem>>, vector<1x128xf32>
    %cst_22 = arith.constant dense<0.000000e+00> : vector<8x128xf32>
    %27 = tpu.matmul %24, %25, %cst_22 {dimension_numbers = #tpu.dot_dimension_numbers<[1], [0], [0], [1], [0, 0, 1, 1], [], []>} : vector<8x128xbf16>, vector<128x128xbf16>, vector<8x128xf32> -> vector<8x128xf32>
    %28 = vector.broadcast %26 : vector<1x128xf32> to vector<8x128xf32>
    %29 = arith.addf %27, %28 : vector<8x128xf32>
    %cst_23 = arith.constant 0.000000e+00 : f32
    %30 = vector.broadcast %cst_23 : f32 to vector<8x128xf32>
    %31 = arith.maximumf %29, %30 : vector<8x128xf32>
    %32 = arith.truncf %31 : vector<8x128xf32> to vector<8x128xbf16>
    %c0_24 = arith.constant 0 : index
    %c0_25 = arith.constant 0 : index
    %33 = vector.load %arg10[%c0_24, %c0_25] : memref<8x128xbf16, #tpu.memory_space<vmem>>, vector<8x128xbf16>
    tpu.vector_store %arg10[%c0_24, %c0_25], %32 {strides = array<i32>} : memref<8x128xbf16, #tpu.memory_space<vmem>>, vector<8x128xbf16>,
    return
  }
  func.func @transform_0(%arg0: i32) -> (i32, i32) {
    %c0_i32 = arith.constant 0 : i32
    %c0_i32_0 = arith.constant 0 : i32
    return %arg0, %c0_i32 : i32, i32
  }
  func.func @transform_1(%arg0: i32) -> (i32, i32) {
    %c0_i32 = arith.constant 0 : i32
    %c0_i32_0 = arith.constant 0 : i32
    %c0_i32_1 = arith.constant 0 : i32
    return %c0_i32, %c0_i32_0 : i32, i32
  }
  func.func @transform_2(%arg0: i32) -> (i32, i32) {
    %c0_i32 = arith.constant 0 : i32
    %c0_i32_0 = arith.constant 0 : i32
    %c0_i32_1 = arith.constant 0 : i32
    return %c0_i32, %c0_i32_0 : i32, i32
  }
  func.func @transform_3(%arg0: i32) -> (i32, i32) {
    %c0_i32 = arith.constant 0 : i32
    %c0_i32_0 = arith.constant 0 : i32
    %c0_i32_1 = arith.constant 0 : i32
    return %c0_i32, %c0_i32_0 : i32, i32
  }
  func.func @transform_4(%arg0: i32) -> (i32, i32) {
    %c0_i32 = arith.constant 0 : i32
    %c0_i32_0 = arith.constant 0 : i32
    %c0_i32_1 = arith.constant 0 : i32
    return %c0_i32, %c0_i32_0 : i32, i32
  }
  func.func @transform_5(%arg0: i32) -> (i32, i32) {
    %c0_i32 = arith.constant 0 : i32
    %c0_i32_0 = arith.constant 0 : i32
    %c0_i32_1 = arith.constant 0 : i32
    return %c0_i32, %c0_i32_0 : i32, i32
  }
  func.func @transform_6(%arg0: i32) -> (i32, i32) {
    %c0_i32 = arith.constant 0 : i32
    %c0_i32_0 = arith.constant 0 : i32
    %c0_i32_1 = arith.constant 0 : i32
    return %c0_i32, %c0_i32_0 : i32, i32
  }
  func.func @transform_7(%arg0: i32) -> (i32, i32) {
    %c0_i32 = arith.constant 0 : i32
    %c0_i32_0 = arith.constant 0 : i32
    %c0_i32_1 = arith.constant 0 : i32
    return %c0_i32, %c0_i32_0 : i32, i32
  }
  func.func @transform_8(%arg0: i32) -> (i32, i32) {
    %c0_i32 = arith.constant 0 : i32
    %c0_i32_0 = arith.constant 0 : i32
    %c0_i32_1 = arith.constant 0 : i32
    return %c0_i32, %c0_i32_0 : i32, i32
  }
  func.func @transform_9(%arg0: i32) -> (i32, i32) {
    %c0_i32 = arith.constant 0 : i32
    %c0_i32_0 = arith.constant 0 : i32
    return %arg0, %c0_i32 : i32, i32
  }
}

module attributes {stable_mosaic.version = 11 : i64} {
  func.func @_fused_dae_kernel(%arg0: i32, %arg1: memref<8x128xbf16, #tpu.memory_space<vmem>>, %arg2: memref<128x128xbf16, #tpu.memory_space<vmem>>, %arg3: memref<1x128xf32, #tpu.memory_space<vmem>>, %arg4: memref<128x128xbf16, #tpu.memory_space<vmem>>, %arg5: memref<1x128xf32, #tpu.memory_space<vmem>>, %arg6: memref<128x128xbf16, #tpu.memory_space<vmem>>, %arg7: memref<1x128xf32, #tpu.memory_space<vmem>>, %arg8: memref<128x128xbf16, #tpu.memory_space<vmem>>, %arg9: memref<1x128xf32, #tpu.memory_space<vmem>>, %arg10: memref<8x128xbf16, #tpu.memory_space<vmem>>) attributes {dimension_semantics = [#tpu.dimension_semantics<parallel>], iteration_bounds = array<i64: 1>, scalar_prefetch = 0 : i64, scratch_operands = 0 : i64, tpu.core_type = #tpu.core_type<tc>, window_params = [{transform_indices = @transform_0, window_bounds = array<i64: 8, 128>}, {pipeline_mode = #tpu.pipeline_mode<synchronous>, transform_indices = @transform_1, window_bounds = array<i64: 128, 128>}, {pipeline_mode = #tpu.pipeline_mode<synchronous>, transform_indices = @transform_2, window_bounds = array<i64: 1, 128>}, {pipeline_mode = #tpu.pipeline_mode<synchronous>, transform_indices = @transform_3, window_bounds = array<i64: 128, 128>}, {pipeline_mode = #tpu.pipeline_mode<synchronous>, transform_indices = @transform_4, window_bounds = array<i64: 1, 128>}, {pipeline_mode = #tpu.pipeline_mode<synchronous>, transform_indices = @transform_5, window_bounds = array<i64: 128, 128>}, {pipeline_mode = #tpu.pipeline_mode<synchronous>, transform_indices = @transform_6, window_bounds = array<i64: 1, 128>}, {pipeline_mode = #tpu.pipeline_mode<synchronous>, transform_indices = @transform_7, window_bounds = array<i64: 128, 128>}, {pipeline_mode = #tpu.pipeline_mode<synchronous>, transform_indices = @transform_8, window_bounds = array<i64: 1, 128>}, {transform_indices = @transform_9, window_bounds = array<i64: 8, 128>}]} {
    %c0 = arith.constant 0 : index
    %c0_0 = arith.constant 0 : index
    %0 = vector.load %arg1[%c0, %c0_0] : memref<8x128xbf16, #tpu.memory_space<vmem>>, vector<8x128xbf16>
    %c0_1 = arith.constant 0 : index
    %c0_2 = arith.constant 0 : index
    %1 = vector.load %arg2[%c0_1, %c0_2] : memref<128x128xbf16, #tpu.memory_space<vmem>>, vector<128x128xbf16>
    %c0_3 = arith.constant 0 : index
    %c0_4 = arith.constant 0 : index
    %2 = vector.load %arg3[%c0_3, %c0_4] : memref<1x128xf32, #tpu.memory_space<vmem>>, vector<1x128xf32>
    %cst = arith.constant dense<0.000000e+00> : vector<8x128xf32>
    %3 = tpu.matmul %0, %1, %cst {dimension_numbers = #tpu.dot_dimension_numbers<[1], [0], [0], [1], [0, 0, 1, 1], [], []>} : vector<8x128xbf16>, vector<128x128xbf16>, vector<8x128xf32> -> vector<8x128xf32>
    %4 = vector.broadcast %2 : vector<1x128xf32> to vector<8x128xf32>
    %5 = arith.addf %3, %4 : vector<8x128xf32>
    %cst_5 = arith.constant 0.000000e+00 : f32
    %6 = vector.broadcast %cst_5 : f32 to vector<8x128xf32>
    %7 = arith.maximumf %5, %6 : vector<8x128xf32>
    %8 = arith.truncf %7 : vector<8x128xf32> to vector<8x128xbf16>
    %c0_6 = arith.constant 0 : index
    %c0_7 = arith.constant 0 : index
    %9 = vector.load %arg4[%c0_6, %c0_7] : memref<128x128xbf16, #tpu.memory_space<vmem>>, vector<128x128xbf16>
    %c0_8 = arith.constant 0 : index
    %c0_9 = arith.constant 0 : index
    %10 = vector.load %arg5[%c0_8, %c0_9] : memref<1x128xf32, #tpu.memory_space<vmem>>, vector<1x128xf32>
    %cst_10 = arith.constant dense<0.000000e+00> : vector<8x128xf32>
    %11 = tpu.matmul %8, %9, %cst_10 {dimension_numbers = #tpu.dot_dimension_numbers<[1], [0], [0], [1], [0, 0, 1, 1], [], []>} : vector<8x128xbf16>, vector<128x128xbf16>, vector<8x128xf32> -> vector<8x128xf32>
    %12 = vector.broadcast %10 : vector<1x128xf32> to vector<8x128xf32>
    %13 = arith.addf %11, %12 : vector<8x128xf32>
    %cst_11 = arith.constant 0.000000e+00 : f32
    %14 = vector.broadcast %cst_11 : f32 to vector<8x128xf32>
    %15 = arith.maximumf %13, %14 : vector<8x128xf32>
    %16 = arith.truncf %15 : vector<8x128xf32> to vector<8x128xbf16>
    %c0_12 = arith.constant 0 : index
    %c0_13 = arith.constant 0 : index
    %17 = vector.load %arg6[%c0_12, %c0_13] : memref<128x128xbf16, #tpu.memory_space<vmem>>, vector<128x128xbf16>
    %c0_14 = arith.constant 0 : index
    %c0_15 = arith.constant 0 : index
    %18 = vector.load %arg7[%c0_14, %c0_15] : memref<1x128xf32, #tpu.memory_space<vmem>>, vector<1x128xf32>
    %cst_16 = arith.constant dense<0.000000e+00> : vector<8x128xf32>
    %19 = tpu.matmul %16, %17, %cst_16 {dimension_numbers = #tpu.dot_dimension_numbers<[1], [0], [0], [1], [0, 0, 1, 1], [], []>} : vector<8x128xbf16>, vector<128x128xbf16>, vector<8x128xf32> -> vector<8x128xf32>
    %20 = vector.broadcast %18 : vector<1x128xf32> to vector<8x128xf32>
    %21 = arith.addf %19, %20 : vector<8x128xf32>
    %cst_17 = arith.constant 0.000000e+00 : f32
    %22 = vector.broadcast %cst_17 : f32 to vector<8x128xf32>
    %23 = arith.maximumf %21, %22 : vector<8x128xf32>
    %24 = arith.truncf %23 : vector<8x128xf32> to vector<8x128xbf16>
    %c0_18 = arith.constant 0 : index
    %c0_19 = arith.constant 0 : index
    %25 = vector.load %arg8[%c0_18, %c0_19] : memref<128x128xbf16, #tpu.memory_space<vmem>>, vector<128x128xbf16>
    %c0_20 = arith.constant 0 : index
    %c0_21 = arith.constant 0 : index
    %26 = vector.load %arg9[%c0_20, %c0_21] : memref<1x128xf32, #tpu.memory_space<vmem>>, vector<1x128xf32>
    %cst_22 = arith.constant dense<0.000000e+00> : vector<8x128xf32>
    %27 = tpu.matmul %24, %25, %cst_22 {dimension_numbers = #tpu.dot_dimension_numbers<[1], [0], [0], [1], [0, 0, 1, 1], [], []>} : vector<8x128xbf16>, vector<128x128xbf16>, vector<8x128xf32> -> vector<8x128xf32>
    %28 = vector.broadcast %26 : vector<1x128xf32> to vector<8x128xf32>
    %29 = arith.addf %27, %28 : vector<8x128xf32>
    %cst_23 = arith.constant 0.000000e+00 : f32
    %30 = vector.broadcast %cst_23 : f32 to vector<8x128xf32>
    %31 = arith.maximumf %29, %30 : vector<8x128xf32>
    %32 = arith.truncf %31 : vector<8x128xf32> to vector<8x128xbf16>
    %c0_24 = arith.constant 0 : index
    %c0_25 = arith.constant 0 : index
    %33 = vector.load %arg10[%c0_24, %c0_25] : memref<8x128xbf16, #tpu.memory_space<vmem>>, vector<8x128xbf16>
    tpu.vector_store %arg10[%c0_24, %c0_25], %32 {strides = array<i32>} : memref<8x128xbf16, #tpu.memory_space<vmem>>, vector<8x128xbf16>,
    return
  }
  func.func @transform_0(%arg0: i32) -> (i32, i32) {
    %c0_i32 = arith.constant 0 : i32
    %c0_i32_0 = arith.constant 0 : i32
    return %arg0, %c0_i32 : i32, i32
  }
  func.func @transform_1(%arg0: i32) -> (i32, i32) {
    %c0_i32 = arith.constant 0 : i32
    %c0_i32_0 = arith.constant 0 : i32
    %c0_i32_1 = arith.constant 0 : i32
    return %c0_i32, %c0_i32_0 : i32, i32
  }
  func.func @transform_2(%arg0: i32) -> (i32, i32) {
    %c0_i32 = arith.constant 0 : i32
    %c0_i32_0 = arith.constant 0 : i32
    %c0_i32_1 = arith.constant 0 : i32
    return %c0_i32, %c0_i32_0 : i32, i32
  }
  func.func @transform_3(%arg0: i32) -> (i32, i32) {
    %c0_i32 = arith.constant 0 : i32
    %c0_i32_0 = arith.constant 0 : i32
    %c0_i32_1 = arith.constant 0 : i32
    return %c0_i32, %c0_i32_0 : i32, i32
  }
  func.func @transform_4(%arg0: i32) -> (i32, i32) {
    %c0_i32 = arith.constant 0 : i32
    %c0_i32_0 = arith.constant 0 : i32
    %c0_i32_1 = arith.constant 0 : i32
    return %c0_i32, %c0_i32_0 : i32, i32
  }
  func.func @transform_5(%arg0: i32) -> (i32, i32) {
    %c0_i32 = arith.constant 0 : i32
    %c0_i32_0 = arith.constant 0 : i32
    %c0_i32_1 = arith.constant 0 : i32
    return %c0_i32, %c0_i32_0 : i32, i32
  }
  func.func @transform_6(%arg0: i32) -> (i32, i32) {
    %c0_i32 = arith.constant 0 : i32
    %c0_i32_0 = arith.constant 0 : i32
    %c0_i32_1 = arith.constant 0 : i32
    return %c0_i32, %c0_i32_0 : i32, i32
  }
  func.func @transform_7(%arg0: i32) -> (i32, i32) {
    %c0_i32 = arith.constant 0 : i32
    %c0_i32_0 = arith.constant 0 : i32
    %c0_i32_1 = arith.constant 0 : i32
    return %c0_i32, %c0_i32_0 : i32, i32
  }
  func.func @transform_8(%arg0: i32) -> (i32, i32) {
    %c0_i32 = arith.constant 0 : i32
    %c0_i32_0 = arith.constant 0 : i32
    %c0_i32_1 = arith.constant 0 : i32
    return %c0_i32, %c0_i32_0 : i32, i32
  }
  func.func @transform_9(%arg0: i32) -> (i32, i32) {
    %c0_i32 = arith.constant 0 : i32
    %c0_i32_0 = arith.constant 0 : i32
    return %arg0, %c0_i32 : i32, i32
  }
}

</mosaic_0001>

<llo_original>
// kernel: _forward.1
$region0: #{_forward.1}
  #allocation0 [shape = 'u32[]', space=smem, size = 0x4, offset = 0x4, fixed_abs, tag = 'smem constant byte address 0x4 - core index']
  #allocation1 [shape = 'u32[72,128]{1,0:T(1,128)}', space=vmem, size = 0x9000, scoped, tag = 'internal scratch']
  %s0 = inlined_call_operand.vmem [shape: bf16[8,128], index: 0, kind: input, shape index: {}]
  %s1 = inlined_call_operand.hbm [shape: bf16[128,128], index: 1, kind: input, shape index: {}]
  %s2 = inlined_call_operand.vmem [shape: f32[1,128], index: 2, kind: input, shape index: {}]
  %s3 = inlined_call_operand.hbm [shape: bf16[128,128], index: 3, kind: input, shape index: {}]
  %s4 = inlined_call_operand.vmem [shape: f32[1,128], index: 4, kind: input, shape index: {}]
  %s5 = inlined_call_operand.hbm [shape: bf16[128,128], index: 5, kind: input, shape index: {}]
  %s6 = inlined_call_operand.vmem [shape: f32[1,128], index: 6, kind: input, shape index: {}]
  %s7 = inlined_call_operand.hbm [shape: bf16[128,128], index: 7, kind: input, shape index: {}]
  %s8 = inlined_call_operand.vmem [shape: f32[1,128], index: 8, kind: input, shape index: {}]
  %s9 = inlined_call_operand.hbm [shape: bf16[8,128], index: 9, kind: output, shape index: {}]
  %s10 = sld [smem:[#allocation0]]
  $region62: #{_forward.1} parent=0
    _
  %s12 = ssub.s32 1, %s10
  %s13 = scalar_select 0, %s12, %s10
  $region1: #{_forward.1} parent=0
    #allocation2 [shape = 'u8[32768]{0}', space=vmem, size = 0x8000, scoped, tag = 'input window, operand 1, single buffered']
    #allocation3 [shape = 's32[1]{0}', space=sflag, size = 0x4, scoped, tag = 'scoped memory for _forward.1']
    #allocation4 [shape = 's32[1]{0}', space=sflag, size = 0x4, scoped, tag = 'scoped memory for _forward.1']
    #allocation5 [shape = 'u8[32768]{0}', space=vmem, size = 0x8000, scoped, tag = 'input window, operand 3, single buffered']
    #allocation6 [shape = 's32[1]{0}', space=sflag, size = 0x4, scoped, tag = 'scoped memory for _forward.1']
    #allocation7 [shape = 'u8[32768]{0}', space=vmem, size = 0x8000, scoped, tag = 'input window, operand 5, single buffered']
    #allocation8 [shape = 'u8[32768]{0}', space=vmem, size = 0x8000, scoped, tag = 'input window, operand 7, single buffered']
    #allocation9 [shape = 's32[1]{0}', space=sflag, size = 0x4, scoped, tag = 'scoped memory for _forward.1']
    #allocation10 [shape = 'u8[2048]{0}', space=vmem, size = 0x800, scoped, tag = 'output window, operand 0, single buffered']
    %14 = vsyncpa [#allocation3], 0
    %15 = vsyncpa [#allocation6], 0
    %16 = vsyncpa [#allocation9], 0
    %17 = vsyncpa [#allocation4], 0
    // Predicated region
    $region2: #{_forward.1} parent=1 // pred_check
      _
    $region3: #{_forward.1} parent=1 // pred_check_branch
      %19 = sbr.rel (0) target = $region5
    $region4: #{_forward.1} parent=1 // pred_region
      _
    $region5: #{_forward.1} parent=1 // pred_fallthru
      _
    // Predicated region
    $region6: #{_forward.1} parent=1 // pred_check
      _
    $region7: #{_forward.1} parent=1 // pred_check_branch
      %21 = sbr.rel (0) target = $region9
    $region8: #{_forward.1} parent=1 // pred_region
      %23 = vsyncadd [#allocation3], 0
      %s24 = sshll.u32 %s1, 4
      %s25 = int_to_ptr.hbm [resolvable:$true] %s24
      %s26 = sshll.u32 [#allocation2], 4
      %s27 = int_to_ptr.vmem [resolvable:$true] %s26
      %32 = dma.hbm_to_vmem [thread:$0]  %s25, 1024, %s27, [#allocation3], 64, 64, 4
    $region9: #{_forward.1} parent=1 // pred_fallthru
      _
    // Predicated region
    $region10: #{_forward.1} parent=1 // pred_check
      _
    $region11: #{_forward.1} parent=1 // pred_check_branch
      %34 = sbr.rel (0) target = $region13
    $region12: #{_forward.1} parent=1 // pred_region
      _
    $region13: #{_forward.1} parent=1 // pred_fallthru
      _
    // Predicated region
    $region14: #{_forward.1} parent=1 // pred_check
      _
    $region15: #{_forward.1} parent=1 // pred_check_branch
      %36 = sbr.rel (0) target = $region17
    $region16: #{_forward.1} parent=1 // pred_region
      %38 = vsyncadd [#allocation6], 0
      %s39 = sshll.u32 %s3, 4
      %s40 = int_to_ptr.hbm [resolvable:$true] %s39
      %s41 = sshll.u32 [#allocation5], 4
      %s42 = int_to_ptr.vmem [resolvable:$true] %s41
      %47 = dma.hbm_to_vmem [thread:$0]  %s40, 1024, %s42, [#allocation6], 64, 64, 4
    $region17: #{_forward.1} parent=1 // pred_fallthru
      _
    // Predicated region
    $region18: #{_forward.1} parent=1 // pred_check
      _
    $region19: #{_forward.1} parent=1 // pred_check_branch
      %49 = sbr.rel (0) target = $region21
    $region20: #{_forward.1} parent=1 // pred_region
      _
    $region21: #{_forward.1} parent=1 // pred_fallthru
      _
    // Predicated region
    $region22: #{_forward.1} parent=1 // pred_check
      _
    $region23: #{_forward.1} parent=1 // pred_check_branch
      %51 = sbr.rel (0) target = $region25
    $region24: #{_forward.1} parent=1 // pred_region
      %53 = vsyncadd [#allocation6], 0
      %s54 = sshll.u32 %s5, 4
      %s55 = int_to_ptr.hbm [resolvable:$true] %s54
      %s56 = sshll.u32 [#allocation7], 4
      %s57 = int_to_ptr.vmem [resolvable:$true] %s56
      %62 = dma.hbm_to_vmem [thread:$0]  %s55, 1024, %s57, [#allocation6], 64, 64, 4
    $region25: #{_forward.1} parent=1 // pred_fallthru
      _
    // Predicated region
    $region26: #{_forward.1} parent=1 // pred_check
      _
    $region27: #{_forward.1} parent=1 // pred_check_branch
      %64 = sbr.rel (0) target = $region29
    $region28: #{_forward.1} parent=1 // pred_region
      _
    $region29: #{_forward.1} parent=1 // pred_fallthru
      _
    // Predicated region
    $region30: #{_forward.1} parent=1 // pred_check
      _
    $region31: #{_forward.1} parent=1 // pred_check_branch
      %66 = sbr.rel (0) target = $region33
    $region32: #{_forward.1} parent=1 // pred_region
      %68 = vsyncadd [#allocation9], 0
      %s69 = sshll.u32 %s7, 4
      %s70 = int_to_ptr.hbm [resolvable:$true] %s69
      %s71 = sshll.u32 [#allocation8], 4
      %s72 = int_to_ptr.vmem [resolvable:$true] %s71
      %77 = dma.hbm_to_vmem [thread:$0]  %s70, 1024, %s72, [#allocation9], 64, 64, 4
    $region33: #{_forward.1} parent=1 // pred_fallthru
      _
    // Predicated region
    $region34: #{_forward.1} parent=1 // pred_check
      _
    $region35: #{_forward.1} parent=1 // pred_check_branch
      %79 = sbr.rel (0) target = $region37
    $region36: #{_forward.1} parent=1 // pred_region
      _
    $region37: #{_forward.1} parent=1 // pred_fallthru
      _
    // Predicated region
    $region38: #{_forward.1} parent=1 // pred_check
      _
    $region39: #{_forward.1} parent=1 // pred_check_branch
      %81 = sbr.rel (0) target = $region41
    $region40: #{_forward.1} parent=1 // pred_region
      %83 = dma.done [#allocation3], 1024
    $region41: #{_forward.1} parent=1 // pred_fallthru
      _
    // Predicated region
    $region42: #{_forward.1} parent=1 // pred_check
      _
    $region43: #{_forward.1} parent=1 // pred_check_branch
      %85 = sbr.rel (0) target = $region45
    $region44: #{_forward.1} parent=1 // pred_region
      %87 = dma.done [#allocation6], 1024
    $region45: #{_forward.1} parent=1 // pred_fallthru
      _
    // Predicated region
    $region46: #{_forward.1} parent=1 // pred_check
      _
    $region47: #{_forward.1} parent=1 // pred_check_branch
      %89 = sbr.rel (0) target = $region49
    $region48: #{_forward.1} parent=1 // pred_region
      %91 = dma.done [#allocation6], 1024
    $region49: #{_forward.1} parent=1 // pred_fallthru
      _
    // Predicated region
    $region50: #{_forward.1} parent=1 // pred_check
      _
    $region51: #{_forward.1} parent=1 // pred_check_branch
      %93 = sbr.rel (0) target = $region53
    $region52: #{_forward.1} parent=1 // pred_region
      %95 = dma.done [#allocation9], 1024
    $region53: #{_forward.1} parent=1 // pred_fallthru
      _
    %v96 = vld [vmem:[%s0] sm:$0xf]
    %v97 = vld [vmem:[#allocation2] sm:$0xf]
    %v98 = vld [vmem:[#allocation2 + $0x4] sm:$0xf]
    %v99 = vld [vmem:[#allocation2 + $0x8] sm:$0xf]
    %v100 = vld [vmem:[#allocation2 + $0xc] sm:$0xf]
    %v101 = vld [vmem:[#allocation2 + $0x10] sm:$0xf]
    %v102 = vld [vmem:[#allocation2 + $0x14] sm:$0xf]
    %v103 = vld [vmem:[#allocation2 + $0x18] sm:$0xf]
    %v104 = vld [vmem:[#allocation2 + $0x1c] sm:$0xf]
    %v105 = vld [vmem:[#allocation2 + $0x20] sm:$0xf]
    %v106 = vld [vmem:[#allocation2 + $0x24] sm:$0xf]
    %v107 = vld [vmem:[#allocation2 + $0x28] sm:$0xf]
    %v108 = vld [vmem:[#allocation2 + $0x2c] sm:$0xf]
    %v109 = vld [vmem:[#allocation2 + $0x30] sm:$0xf]
    %v110 = vld [vmem:[#allocation2 + $0x34] sm:$0xf]
    %v111 = vld [vmem:[#allocation2 + $0x38] sm:$0xf]
    %v112 = vld [vmem:[#allocation2 + $0x3c] sm:$0xf]
    %v113 = vld [vmem:[%s2] sm:$0x1]
    %v115 = vperm.slane %v113, 0
    %v133 = vunpack.c.l.b16 %v97
    %v134 = vunpack.c.l.b16 %v98
    %v135 = vunpack.c.l.b16 %v99
    %v136 = vunpack.c.l.b16 %v100
    %v137 = vunpack.c.l.b16 %v101
    %v138 = vunpack.c.l.b16 %v102
    %v139 = vunpack.c.l.b16 %v103
    %v140 = vunpack.c.l.b16 %v104
    %v141 = vunpack.c.l.b16 %v105
    %v142 = vunpack.c.l.b16 %v106
    %v143 = vunpack.c.l.b16 %v107
    %v144 = vunpack.c.l.b16 %v108
    %v145 = vunpack.c.l.b16 %v109
    %v146 = vunpack.c.l.b16 %v110
    %v147 = vunpack.c.l.b16 %v111
    %v148 = vunpack.c.l.b16 %v112
    %v149 = vpack.c.b16 %v134, %v133
    %v150 = vpack.c.b16 %v136, %v135
    %v151 = vpack.c.b16 %v138, %v137
    %v152 = vpack.c.b16 %v140, %v139
    %v153 = vpack.c.b16 %v142, %v141
    %v154 = vpack.c.b16 %v144, %v143
    %v155 = vpack.c.b16 %v146, %v145
    %v156 = vpack.c.b16 %v148, %v147
    %165 = vmatpush.bf16.msra.mxu0 %v156
    %166 = vmatpush.bf16.msra.mxu0 %v155
    %167 = vmatpush.bf16.msra.mxu0 %v154
    %168 = vmatpush.bf16.msra.mxu0 %v153
    %169 = vmatpush.bf16.msra.mxu0 %v152
    %170 = vmatpush.bf16.msra.mxu0 %v151
    %171 = vmatpush.bf16.msra.mxu0 %v150
    %172 = vmatpush.bf16.msra.mxu0 %v149
    %173 = vmatmul.bf16.gmra.mxu0 %v96
    %v174 = vpop.f32.mrf.mxu0
    %v175 = vadd.f32 %v115, %v174
    %v176 = vpop.f32.mrf.mxu0
    %177 = vdwg.mxu0
    %v178 = vmax.f32 %v175, 0.0
    %v179 = vpack.c.bf16 %v178, %v178
    %v180 = vld [vmem:[#allocation5] sm:$0xf]
    %v181 = vld [vmem:[#allocation5 + $0x4] sm:$0xf]
    %v182 = vld [vmem:[#allocation5 + $0x8] sm:$0xf]
    %v183 = vld [vmem:[#allocation5 + $0xc] sm:$0xf]
    %v184 = vld [vmem:[#allocation5 + $0x10] sm:$0xf]
    %v185 = vld [vmem:[#allocation5 + $0x14] sm:$0xf]
    %v186 = vld [vmem:[#allocation5 + $0x18] sm:$0xf]
    %v187 = vld [vmem:[#allocation5 + $0x1c] sm:$0xf]
    %v188 = vld [vmem:[#allocation5 + $0x20] sm:$0xf]
    %v189 = vld [vmem:[#allocation5 + $0x24] sm:$0xf]
    %v190 = vld [vmem:[#allocation5 + $0x28] sm:$0xf]
    %v191 = vld [vmem:[#allocation5 + $0x2c] sm:$0xf]
    %v192 = vld [vmem:[#allocation5 + $0x30] sm:$0xf]
    %v193 = vld [vmem:[#allocation5 + $0x34] sm:$0xf]
    %v194 = vld [vmem:[#allocation5 + $0x38] sm:$0xf]
    %v195 = vld [vmem:[#allocation5 + $0x3c] sm:$0xf]
    %v196 = vld [vmem:[%s4] sm:$0x1]
    %v198 = vperm.slane %v196, 0
    %v216 = vunpack.c.l.b16 %v180
    %v217 = vunpack.c.l.b16 %v181
    %v218 = vunpack.c.l.b16 %v182
    %v219 = vunpack.c.l.b16 %v183
    %v220 = vunpack.c.l.b16 %v184
    %v221 = vunpack.c.l.b16 %v185
    %v222 = vunpack.c.l.b16 %v186
    %v223 = vunpack.c.l.b16 %v187
    %v224 = vunpack.c.l.b16 %v188
    %v225 = vunpack.c.l.b16 %v189
    %v226 = vunpack.c.l.b16 %v190
    %v227 = vunpack.c.l.b16 %v191
    %v228 = vunpack.c.l.b16 %v192
    %v229 = vunpack.c.l.b16 %v193
    %v230 = vunpack.c.l.b16 %v194
    %v231 = vunpack.c.l.b16 %v195
    %v232 = vpack.c.b16 %v217, %v216
    %v233 = vpack.c.b16 %v219, %v218
    %v234 = vpack.c.b16 %v221, %v220
    %v235 = vpack.c.b16 %v223, %v222
    %v236 = vpack.c.b16 %v225, %v224
    %v237 = vpack.c.b16 %v227, %v226
    %v238 = vpack.c.b16 %v229, %v228
    %v239 = vpack.c.b16 %v231, %v230
    %248 = vmatpush.bf16.msra.mxu0 %v239
    %249 = vmatpush.bf16.msra.mxu0 %v238
    %250 = vmatpush.bf16.msra.mxu0 %v237
    %251 = vmatpush.bf16.msra.mxu0 %v236
    %252 = vmatpush.bf16.msra.mxu0 %v235
    %253 = vmatpush.bf16.msra.mxu0 %v234
    %254 = vmatpush.bf16.msra.mxu0 %v233
    %255 = vmatpush.bf16.msra.mxu0 %v232
    %256 = vmatmul.bf16.gmra.mxu0 %v179
    %v257 = vpop.f32.mrf.mxu0
    %v258 = vadd.f32 %v198, %v257
    %v259 = vpop.f32.mrf.mxu0
    %260 = vdwg.mxu0
    %v261 = vmax.f32 %v258, 0.0
    %v262 = vpack.c.bf16 %v261, %v261
    %v263 = vld [vmem:[#allocation7] sm:$0xf]
    %v264 = vld [vmem:[#allocation7 + $0x4] sm:$0xf]
    %v265 = vld [vmem:[#allocation7 + $0x8] sm:$0xf]
    %v266 = vld [vmem:[#allocation7 + $0xc] sm:$0xf]
    %v267 = vld [vmem:[#allocation7 + $0x10] sm:$0xf]
    %v268 = vld [vmem:[#allocation7 + $0x14] sm:$0xf]
    %v269 = vld [vmem:[#allocation7 + $0x18] sm:$0xf]
    %v270 = vld [vmem:[#allocation7 + $0x1c] sm:$0xf]
    %v271 = vld [vmem:[#allocation7 + $0x20] sm:$0xf]
    %v272 = vld [vmem:[#allocation7 + $0x24] sm:$0xf]
    %v273 = vld [vmem:[#allocation7 + $0x28] sm:$0xf]
    %v274 = vld [vmem:[#allocation7 + $0x2c] sm:$0xf]
    %v275 = vld [vmem:[#allocation7 + $0x30] sm:$0xf]
    %v276 = vld [vmem:[#allocation7 + $0x34] sm:$0xf]
    %v277 = vld [vmem:[#allocation7 + $0x38] sm:$0xf]
    %v278 = vld [vmem:[#allocation7 + $0x3c] sm:$0xf]
    %v279 = vld [vmem:[%s6] sm:$0x1]
    %v281 = vperm.slane %v279, 0
    %v299 = vunpack.c.l.b16 %v263
    %v300 = vunpack.c.l.b16 %v264
    %v301 = vunpack.c.l.b16 %v265
    %v302 = vunpack.c.l.b16 %v266
    %v303 = vunpack.c.l.b16 %v267
    %v304 = vunpack.c.l.b16 %v268
    %v305 = vunpack.c.l.b16 %v269
    %v306 = vunpack.c.l.b16 %v270
    %v307 = vunpack.c.l.b16 %v271
    %v308 = vunpack.c.l.b16 %v272
    %v309 = vunpack.c.l.b16 %v273
    %v310 = vunpack.c.l.b16 %v274
    %v311 = vunpack.c.l.b16 %v275
    %v312 = vunpack.c.l.b16 %v276
    %v313 = vunpack.c.l.b16 %v277
    %v314 = vunpack.c.l.b16 %v278
    %v315 = vpack.c.b16 %v300, %v299
    %v316 = vpack.c.b16 %v302, %v301
    %v317 = vpack.c.b16 %v304, %v303
    %v318 = vpack.c.b16 %v306, %v305
    %v319 = vpack.c.b16 %v308, %v307
    %v320 = vpack.c.b16 %v310, %v309
    %v321 = vpack.c.b16 %v312, %v311
    %v322 = vpack.c.b16 %v314, %v313
    %331 = vmatpush.bf16.msra.mxu0 %v322
    %332 = vmatpush.bf16.msra.mxu0 %v321
    %333 = vmatpush.bf16.msra.mxu0 %v320
    %334 = vmatpush.bf16.msra.mxu0 %v319
    %335 = vmatpush.bf16.msra.mxu0 %v318
    %336 = vmatpush.bf16.msra.mxu0 %v317
    %337 = vmatpush.bf16.msra.mxu0 %v316
    %338 = vmatpush.bf16.msra.mxu0 %v315
    %339 = vmatmul.bf16.gmra.mxu0 %v262
    %v340 = vpop.f32.mrf.mxu0
    %v341 = vadd.f32 %v281, %v340
    %v342 = vpop.f32.mrf.mxu0
    %343 = vdwg.mxu0
    %v344 = vmax.f32 %v341, 0.0
    %v345 = vpack.c.bf16 %v344, %v344
    %v346 = vld [vmem:[#allocation8] sm:$0xf]
    %v347 = vld [vmem:[#allocation8 + $0x4] sm:$0xf]
    %v348 = vld [vmem:[#allocation8 + $0x8] sm:$0xf]
    %v349 = vld [vmem:[#allocation8 + $0xc] sm:$0xf]
    %v350 = vld [vmem:[#allocation8 + $0x10] sm:$0xf]
    %v351 = vld [vmem:[#allocation8 + $0x14] sm:$0xf]
    %v352 = vld [vmem:[#allocation8 + $0x18] sm:$0xf]
    %v353 = vld [vmem:[#allocation8 + $0x1c] sm:$0xf]
    %v354 = vld [vmem:[#allocation8 + $0x20] sm:$0xf]
    %v355 = vld [vmem:[#allocation8 + $0x24] sm:$0xf]
    %v356 = vld [vmem:[#allocation8 + $0x28] sm:$0xf]
    %v357 = vld [vmem:[#allocation8 + $0x2c] sm:$0xf]
    %v358 = vld [vmem:[#allocation8 + $0x30] sm:$0xf]
    %v359 = vld [vmem:[#allocation8 + $0x34] sm:$0xf]
    %v360 = vld [vmem:[#allocation8 + $0x38] sm:$0xf]
    %v361 = vld [vmem:[#allocation8 + $0x3c] sm:$0xf]
    %v362 = vld [vmem:[%s8] sm:$0x1]
    %v364 = vperm.slane %v362, 0
    %v382 = vunpack.c.l.b16 %v346
    %v383 = vunpack.c.l.b16 %v347
    %v384 = vunpack.c.l.b16 %v348
    %v385 = vunpack.c.l.b16 %v349
    %v386 = vunpack.c.l.b16 %v350
    %v387 = vunpack.c.l.b16 %v351
    %v388 = vunpack.c.l.b16 %v352
    %v389 = vunpack.c.l.b16 %v353
    %v390 = vunpack.c.l.b16 %v354
    %v391 = vunpack.c.l.b16 %v355
    %v392 = vunpack.c.l.b16 %v356
    %v393 = vunpack.c.l.b16 %v357
    %v394 = vunpack.c.l.b16 %v358
    %v395 = vunpack.c.l.b16 %v359
    %v396 = vunpack.c.l.b16 %v360
    %v397 = vunpack.c.l.b16 %v361
    %v398 = vpack.c.b16 %v383, %v382
    %v399 = vpack.c.b16 %v385, %v384
    %v400 = vpack.c.b16 %v387, %v386
    %v401 = vpack.c.b16 %v389, %v388
    %v402 = vpack.c.b16 %v391, %v390
    %v403 = vpack.c.b16 %v393, %v392
    %v404 = vpack.c.b16 %v395, %v394
    %v405 = vpack.c.b16 %v397, %v396
    %414 = vmatpush.bf16.msra.mxu0 %v405
    %415 = vmatpush.bf16.msra.mxu0 %v404
    %416 = vmatpush.bf16.msra.mxu0 %v403
    %417 = vmatpush.bf16.msra.mxu0 %v402
    %418 = vmatpush.bf16.msra.mxu0 %v401
    %419 = vmatpush.bf16.msra.mxu0 %v400
    %420 = vmatpush.bf16.msra.mxu0 %v399
    %421 = vmatpush.bf16.msra.mxu0 %v398
    %422 = vmatmul.bf16.gmra.mxu0 %v345
    %v423 = vpop.f32.mrf.mxu0
    %v424 = vadd.f32 %v364, %v423
    %v425 = vpop.f32.mrf.mxu0
    %426 = vdwg.mxu0
    %v427 = vmax.f32 %v424, 0.0
    %v428 = vpack.c.bf16 %v427, %v427
    %429 = vst [vmem:[#allocation10] sm:$0xf] %v428
    // Predicated region
    $region54: #{_forward.1} parent=1 // pred_check
      _
    $region55: #{_forward.1} parent=1 // pred_check_branch
      %431 = sbr.rel (0) target = $region57
    $region56: #{_forward.1} parent=1 // pred_region
      %433 = vsyncadd [#allocation4], 0
      %s435 = sshll.u32 [#allocation10], 4
      %s436 = int_to_ptr.vmem [resolvable:$true] %s435
      %s437 = sshll.u32 %s9, 4
      %s438 = int_to_ptr.hbm [resolvable:$true] %s437
      %440 = dma.vmem_to_hbm [thread:$0]  %s436, 64, %s438, [#allocation4]
    $region57: #{_forward.1} parent=1 // pred_fallthru
      _
    // Predicated region
    $region58: #{_forward.1} parent=1 // pred_check
      _
    $region59: #{_forward.1} parent=1 // pred_check_branch
      %442 = sbr.rel (0) target = $region61
    $region60: #{_forward.1} parent=1 // pred_region
      %444 = dma.done [#allocation4], 64
    $region61: #{_forward.1} parent=1 // pred_fallthru
      _
    %445 = vsyncpa [#allocation3], 1
    %446 = vsyncpa [#allocation6], 1
    %447 = vsyncpa [#allocation9], 1
    %448 = vsyncpa [#allocation4], 1

// kernel: _forward.1
$region0: #{_forward.1}
  #allocation0 [shape = 'u32[]', space=smem, size = 0x4, offset = 0x4, fixed_abs, tag = 'smem constant byte address 0x4 - core index']
  #allocation1 [shape = 'u32[72,128]{1,0:T(1,128)}', space=vmem, size = 0x9000, scoped, tag = 'internal scratch']
  %s0 = inlined_call_operand.vmem [shape: bf16[8,128], index: 0, kind: input, shape index: {}]
  %s1 = inlined_call_operand.hbm [shape: bf16[128,128], index: 1, kind: input, shape index: {}]
  %s2 = inlined_call_operand.vmem [shape: f32[1,128], index: 2, kind: input, shape index: {}]
  %s3 = inlined_call_operand.hbm [shape: bf16[128,128], index: 3, kind: input, shape index: {}]
  %s4 = inlined_call_operand.vmem [shape: f32[1,128], index: 4, kind: input, shape index: {}]
  %s5 = inlined_call_operand.hbm [shape: bf16[128,128], index: 5, kind: input, shape index: {}]
  %s6 = inlined_call_operand.vmem [shape: f32[1,128], index: 6, kind: input, shape index: {}]
  %s7 = inlined_call_operand.hbm [shape: bf16[128,128], index: 7, kind: input, shape index: {}]
  %s8 = inlined_call_operand.vmem [shape: f32[1,128], index: 8, kind: input, shape index: {}]
  %s9 = inlined_call_operand.hbm [shape: bf16[8,128], index: 9, kind: output, shape index: {}]
  %s10 = sld [smem:[#allocation0]]
  $region62: #{_forward.1} parent=0
    _
  %s12 = ssub.s32 1, %s10
  %s13 = scalar_select 0, %s12, %s10
  $region1: #{_forward.1} parent=0
    #allocation2 [shape = 'u8[32768]{0}', space=vmem, size = 0x8000, scoped, tag = 'input window, operand 1, single buffered']
    #allocation3 [shape = 's32[1]{0}', space=sflag, size = 0x4, scoped, tag = 'scoped memory for _forward.1']
    #allocation4 [shape = 's32[1]{0}', space=sflag, size = 0x4, scoped, tag = 'scoped memory for _forward.1']
    #allocation5 [shape = 'u8[32768]{0}', space=vmem, size = 0x8000, scoped, tag = 'input window, operand 3, single buffered']
    #allocation6 [shape = 's32[1]{0}', space=sflag, size = 0x4, scoped, tag = 'scoped memory for _forward.1']
    #allocation7 [shape = 'u8[32768]{0}', space=vmem, size = 0x8000, scoped, tag = 'input window, operand 5, single buffered']
    #allocation8 [shape = 'u8[32768]{0}', space=vmem, size = 0x8000, scoped, tag = 'input window, operand 7, single buffered']
    #allocation9 [shape = 's32[1]{0}', space=sflag, size = 0x4, scoped, tag = 'scoped memory for _forward.1']
    #allocation10 [shape = 'u8[2048]{0}', space=vmem, size = 0x800, scoped, tag = 'output window, operand 0, single buffered']
    %14 = vsyncpa [#allocation3], 0
    %15 = vsyncpa [#allocation6], 0
    %16 = vsyncpa [#allocation9], 0
    %17 = vsyncpa [#allocation4], 0
    // Predicated region
    $region2: #{_forward.1} parent=1 // pred_check
      _
    $region3: #{_forward.1} parent=1 // pred_check_branch
      %19 = sbr.rel (0) target = $region5
    $region4: #{_forward.1} parent=1 // pred_region
      _
    $region5: #{_forward.1} parent=1 // pred_fallthru
      _
    // Predicated region
    $region6: #{_forward.1} parent=1 // pred_check
      _
    $region7: #{_forward.1} parent=1 // pred_check_branch
      %21 = sbr.rel (0) target = $region9
    $region8: #{_forward.1} parent=1 // pred_region
      %23 = vsyncadd [#allocation3], 0
      %s24 = sshll.u32 %s1, 4
      %s25 = int_to_ptr.hbm [resolvable:$true] %s24
      %s26 = sshll.u32 [#allocation2], 4
      %s27 = int_to_ptr.vmem [resolvable:$true] %s26
      %32 = dma.hbm_to_vmem [thread:$0]  %s25, 1024, %s27, [#allocation3], 64, 64, 4
    $region9: #{_forward.1} parent=1 // pred_fallthru
      _
    // Predicated region
    $region10: #{_forward.1} parent=1 // pred_check
      _
    $region11: #{_forward.1} parent=1 // pred_check_branch
      %34 = sbr.rel (0) target = $region13
    $region12: #{_forward.1} parent=1 // pred_region
      _
    $region13: #{_forward.1} parent=1 // pred_fallthru
      _
    // Predicated region
    $region14: #{_forward.1} parent=1 // pred_check
      _
    $region15: #{_forward.1} parent=1 // pred_check_branch
      %36 = sbr.rel (0) target = $region17
    $region16: #{_forward.1} parent=1 // pred_region
      %38 = vsyncadd [#allocation6], 0
      %s39 = sshll.u32 %s3, 4
      %s40 = int_to_ptr.hbm [resolvable:$true] %s39
      %s41 = sshll.u32 [#allocation5], 4
      %s42 = int_to_ptr.vmem [resolvable:$true] %s41
      %47 = dma.hbm_to_vmem [thread:$0]  %s40, 1024, %s42, [#allocation6], 64, 64, 4
    $region17: #{_forward.1} parent=1 // pred_fallthru
      _
    // Predicated region
    $region18: #{_forward.1} parent=1 // pred_check
      _
    $region19: #{_forward.1} parent=1 // pred_check_branch
      %49 = sbr.rel (0) target = $region21
    $region20: #{_forward.1} parent=1 // pred_region
      _
    $region21: #{_forward.1} parent=1 // pred_fallthru
      _
    // Predicated region
    $region22: #{_forward.1} parent=1 // pred_check
      _
    $region23: #{_forward.1} parent=1 // pred_check_branch
      %51 = sbr.rel (0) target = $region25
    $region24: #{_forward.1} parent=1 // pred_region
      %53 = vsyncadd [#allocation6], 0
      %s54 = sshll.u32 %s5, 4
      %s55 = int_to_ptr.hbm [resolvable:$true] %s54
      %s56 = sshll.u32 [#allocation7], 4
      %s57 = int_to_ptr.vmem [resolvable:$true] %s56
      %62 = dma.hbm_to_vmem [thread:$0]  %s55, 1024, %s57, [#allocation6], 64, 64, 4
    $region25: #{_forward.1} parent=1 // pred_fallthru
      _
    // Predicated region
    $region26: #{_forward.1} parent=1 // pred_check
      _
    $region27: #{_forward.1} parent=1 // pred_check_branch
      %64 = sbr.rel (0) target = $region29
    $region28: #{_forward.1} parent=1 // pred_region
      _
    $region29: #{_forward.1} parent=1 // pred_fallthru
      _
    // Predicated region
    $region30: #{_forward.1} parent=1 // pred_check
      _
    $region31: #{_forward.1} parent=1 // pred_check_branch
      %66 = sbr.rel (0) target = $region33
    $region32: #{_forward.1} parent=1 // pred_region
      %68 = vsyncadd [#allocation9], 0
      %s69 = sshll.u32 %s7, 4
      %s70 = int_to_ptr.hbm [resolvable:$true] %s69
      %s71 = sshll.u32 [#allocation8], 4
      %s72 = int_to_ptr.vmem [resolvable:$true] %s71
      %77 = dma.hbm_to_vmem [thread:$0]  %s70, 1024, %s72, [#allocation9], 64, 64, 4
    $region33: #{_forward.1} parent=1 // pred_fallthru
      _
    // Predicated region
    $region34: #{_forward.1} parent=1 // pred_check
      _
    $region35: #{_forward.1} parent=1 // pred_check_branch
      %79 = sbr.rel (0) target = $region37
    $region36: #{_forward.1} parent=1 // pred_region
      _
    $region37: #{_forward.1} parent=1 // pred_fallthru
      _
    // Predicated region
    $region38: #{_forward.1} parent=1 // pred_check
      _
    $region39: #{_forward.1} parent=1 // pred_check_branch
      %81 = sbr.rel (0) target = $region41
    $region40: #{_forward.1} parent=1 // pred_region
      %83 = dma.done [#allocation3], 1024
    $region41: #{_forward.1} parent=1 // pred_fallthru
      _
    // Predicated region
    $region42: #{_forward.1} parent=1 // pred_check
      _
    $region43: #{_forward.1} parent=1 // pred_check_branch
      %85 = sbr.rel (0) target = $region45
    $region44: #{_forward.1} parent=1 // pred_region
      %87 = dma.done [#allocation6], 1024
    $region45: #{_forward.1} parent=1 // pred_fallthru
      _
    // Predicated region
    $region46: #{_forward.1} parent=1 // pred_check
      _
    $region47: #{_forward.1} parent=1 // pred_check_branch
      %89 = sbr.rel (0) target = $region49
    $region48: #{_forward.1} parent=1 // pred_region
      %91 = dma.done [#allocation6], 1024
    $region49: #{_forward.1} parent=1 // pred_fallthru
      _
    // Predicated region
    $region50: #{_forward.1} parent=1 // pred_check
      _
    $region51: #{_forward.1} parent=1 // pred_check_branch
      %93 = sbr.rel (0) target = $region53
    $region52: #{_forward.1} parent=1 // pred_region
      %95 = dma.done [#allocation9], 1024
    $region53: #{_forward.1} parent=1 // pred_fallthru
      _
    %v96 = vld [vmem:[%s0] sm:$0xf]
    %v97 = vld [vmem:[#allocation2] sm:$0xf]
    %v98 = vld [vmem:[#allocation2 + $0x4] sm:$0xf]
    %v99 = vld [vmem:[#allocation2 + $0x8] sm:$0xf]
    %v100 = vld [vmem:[#allocation2 + $0xc] sm:$0xf]
    %v101 = vld [vmem:[#allocation2 + $0x10] sm:$0xf]
    %v102 = vld [vmem:[#allocation2 + $0x14] sm:$0xf]
    %v103 = vld [vmem:[#allocation2 + $0x18] sm:$0xf]
    %v104 = vld [vmem:[#allocation2 + $0x1c] sm:$0xf]
    %v105 = vld [vmem:[#allocation2 + $0x20] sm:$0xf]
    %v106 = vld [vmem:[#allocation2 + $0x24] sm:$0xf]
    %v107 = vld [vmem:[#allocation2 + $0x28] sm:$0xf]
    %v108 = vld [vmem:[#allocation2 + $0x2c] sm:$0xf]
    %v109 = vld [vmem:[#allocation2 + $0x30] sm:$0xf]
    %v110 = vld [vmem:[#allocation2 + $0x34] sm:$0xf]
    %v111 = vld [vmem:[#allocation2 + $0x38] sm:$0xf]
    %v112 = vld [vmem:[#allocation2 + $0x3c] sm:$0xf]
    %v113 = vld [vmem:[%s2] sm:$0x1]
    %v115 = vperm.slane %v113, 0
    %v133 = vunpack.c.l.b16 %v97
    %v134 = vunpack.c.l.b16 %v98
    %v135 = vunpack.c.l.b16 %v99
    %v136 = vunpack.c.l.b16 %v100
    %v137 = vunpack.c.l.b16 %v101
    %v138 = vunpack.c.l.b16 %v102
    %v139 = vunpack.c.l.b16 %v103
    %v140 = vunpack.c.l.b16 %v104
    %v141 = vunpack.c.l.b16 %v105
    %v142 = vunpack.c.l.b16 %v106
    %v143 = vunpack.c.l.b16 %v107
    %v144 = vunpack.c.l.b16 %v108
    %v145 = vunpack.c.l.b16 %v109
    %v146 = vunpack.c.l.b16 %v110
    %v147 = vunpack.c.l.b16 %v111
    %v148 = vunpack.c.l.b16 %v112
    %v149 = vpack.c.b16 %v134, %v133
    %v150 = vpack.c.b16 %v136, %v135
    %v151 = vpack.c.b16 %v138, %v137
    %v152 = vpack.c.b16 %v140, %v139
    %v153 = vpack.c.b16 %v142, %v141
    %v154 = vpack.c.b16 %v144, %v143
    %v155 = vpack.c.b16 %v146, %v145
    %v156 = vpack.c.b16 %v148, %v147
    %165 = vmatpush.bf16.msra.mxu0 %v156
    %166 = vmatpush.bf16.msra.mxu0 %v155
    %167 = vmatpush.bf16.msra.mxu0 %v154
    %168 = vmatpush.bf16.msra.mxu0 %v153
    %169 = vmatpush.bf16.msra.mxu0 %v152
    %170 = vmatpush.bf16.msra.mxu0 %v151
    %171 = vmatpush.bf16.msra.mxu0 %v150
    %172 = vmatpush.bf16.msra.mxu0 %v149
    %173 = vmatmul.bf16.gmra.mxu0 %v96
    %v174 = vpop.f32.mrf.mxu0
    %v175 = vadd.f32 %v115, %v174
    %v176 = vpop.f32.mrf.mxu0
    %177 = vdwg.mxu0
    %v178 = vmax.f32 %v175, 0.0
    %v179 = vpack.c.bf16 %v178, %v178
    %v180 = vld [vmem:[#allocation5] sm:$0xf]
    %v181 = vld [vmem:[#allocation5 + $0x4] sm:$0xf]
    %v182 = vld [vmem:[#allocation5 + $0x8] sm:$0xf]
    %v183 = vld [vmem:[#allocation5 + $0xc] sm:$0xf]
    %v184 = vld [vmem:[#allocation5 + $0x10] sm:$0xf]
    %v185 = vld [vmem:[#allocation5 + $0x14] sm:$0xf]
    %v186 = vld [vmem:[#allocation5 + $0x18] sm:$0xf]
    %v187 = vld [vmem:[#allocation5 + $0x1c] sm:$0xf]
    %v188 = vld [vmem:[#allocation5 + $0x20] sm:$0xf]
    %v189 = vld [vmem:[#allocation5 + $0x24] sm:$0xf]
    %v190 = vld [vmem:[#allocation5 + $0x28] sm:$0xf]
    %v191 = vld [vmem:[#allocation5 + $0x2c] sm:$0xf]
    %v192 = vld [vmem:[#allocation5 + $0x30] sm:$0xf]
    %v193 = vld [vmem:[#allocation5 + $0x34] sm:$0xf]
    %v194 = vld [vmem:[#allocation5 + $0x38] sm:$0xf]
    %v195 = vld [vmem:[#allocation5 + $0x3c] sm:$0xf]
    %v196 = vld [vmem:[%s4] sm:$0x1]
    %v198 = vperm.slane %v196, 0
    %v216 = vunpack.c.l.b16 %v180
    %v217 = vunpack.c.l.b16 %v181
    %v218 = vunpack.c.l.b16 %v182
    %v219 = vunpack.c.l.b16 %v183
    %v220 = vunpack.c.l.b16 %v184
    %v221 = vunpack.c.l.b16 %v185
    %v222 = vunpack.c.l.b16 %v186
    %v223 = vunpack.c.l.b16 %v187
    %v224 = vunpack.c.l.b16 %v188
    %v225 = vunpack.c.l.b16 %v189
    %v226 = vunpack.c.l.b16 %v190
    %v227 = vunpack.c.l.b16 %v191
    %v228 = vunpack.c.l.b16 %v192
    %v229 = vunpack.c.l.b16 %v193
    %v230 = vunpack.c.l.b16 %v194
    %v231 = vunpack.c.l.b16 %v195
    %v232 = vpack.c.b16 %v217, %v216
    %v233 = vpack.c.b16 %v219, %v218
    %v234 = vpack.c.b16 %v221, %v220
    %v235 = vpack.c.b16 %v223, %v222
    %v236 = vpack.c.b16 %v225, %v224
    %v237 = vpack.c.b16 %v227, %v226
    %v238 = vpack.c.b16 %v229, %v228
    %v239 = vpack.c.b16 %v231, %v230
    %248 = vmatpush.bf16.msra.mxu0 %v239
    %249 = vmatpush.bf16.msra.mxu0 %v238
    %250 = vmatpush.bf16.msra.mxu0 %v237
    %251 = vmatpush.bf16.msra.mxu0 %v236
    %252 = vmatpush.bf16.msra.mxu0 %v235
    %253 = vmatpush.bf16.msra.mxu0 %v234
    %254 = vmatpush.bf16.msra.mxu0 %v233
    %255 = vmatpush.bf16.msra.mxu0 %v232
    %256 = vmatmul.bf16.gmra.mxu0 %v179
    %v257 = vpop.f32.mrf.mxu0
    %v258 = vadd.f32 %v198, %v257
    %v259 = vpop.f32.mrf.mxu0
    %260 = vdwg.mxu0
    %v261 = vmax.f32 %v258, 0.0
    %v262 = vpack.c.bf16 %v261, %v261
    %v263 = vld [vmem:[#allocation7] sm:$0xf]
    %v264 = vld [vmem:[#allocation7 + $0x4] sm:$0xf]
    %v265 = vld [vmem:[#allocation7 + $0x8] sm:$0xf]
    %v266 = vld [vmem:[#allocation7 + $0xc] sm:$0xf]
    %v267 = vld [vmem:[#allocation7 + $0x10] sm:$0xf]
    %v268 = vld [vmem:[#allocation7 + $0x14] sm:$0xf]
    %v269 = vld [vmem:[#allocation7 + $0x18] sm:$0xf]
    %v270 = vld [vmem:[#allocation7 + $0x1c] sm:$0xf]
    %v271 = vld [vmem:[#allocation7 + $0x20] sm:$0xf]
    %v272 = vld [vmem:[#allocation7 + $0x24] sm:$0xf]
    %v273 = vld [vmem:[#allocation7 + $0x28] sm:$0xf]
    %v274 = vld [vmem:[#allocation7 + $0x2c] sm:$0xf]
    %v275 = vld [vmem:[#allocation7 + $0x30] sm:$0xf]
    %v276 = vld [vmem:[#allocation7 + $0x34] sm:$0xf]
    %v277 = vld [vmem:[#allocation7 + $0x38] sm:$0xf]
    %v278 = vld [vmem:[#allocation7 + $0x3c] sm:$0xf]
    %v279 = vld [vmem:[%s6] sm:$0x1]
    %v281 = vperm.slane %v279, 0
    %v299 = vunpack.c.l.b16 %v263
    %v300 = vunpack.c.l.b16 %v264
    %v301 = vunpack.c.l.b16 %v265
    %v302 = vunpack.c.l.b16 %v266
    %v303 = vunpack.c.l.b16 %v267
    %v304 = vunpack.c.l.b16 %v268
    %v305 = vunpack.c.l.b16 %v269
    %v306 = vunpack.c.l.b16 %v270
    %v307 = vunpack.c.l.b16 %v271
    %v308 = vunpack.c.l.b16 %v272
    %v309 = vunpack.c.l.b16 %v273
    %v310 = vunpack.c.l.b16 %v274
    %v311 = vunpack.c.l.b16 %v275
    %v312 = vunpack.c.l.b16 %v276
    %v313 = vunpack.c.l.b16 %v277
    %v314 = vunpack.c.l.b16 %v278
    %v315 = vpack.c.b16 %v300, %v299
    %v316 = vpack.c.b16 %v302, %v301
    %v317 = vpack.c.b16 %v304, %v303
    %v318 = vpack.c.b16 %v306, %v305
    %v319 = vpack.c.b16 %v308, %v307
    %v320 = vpack.c.b16 %v310, %v309
    %v321 = vpack.c.b16 %v312, %v311
    %v322 = vpack.c.b16 %v314, %v313
    %331 = vmatpush.bf16.msra.mxu0 %v322
    %332 = vmatpush.bf16.msra.mxu0 %v321
    %333 = vmatpush.bf16.msra.mxu0 %v320
    %334 = vmatpush.bf16.msra.mxu0 %v319
    %335 = vmatpush.bf16.msra.mxu0 %v318
    %336 = vmatpush.bf16.msra.mxu0 %v317
    %337 = vmatpush.bf16.msra.mxu0 %v316
    %338 = vmatpush.bf16.msra.mxu0 %v315
    %339 = vmatmul.bf16.gmra.mxu0 %v262
    %v340 = vpop.f32.mrf.mxu0
    %v341 = vadd.f32 %v281, %v340
    %v342 = vpop.f32.mrf.mxu0
    %343 = vdwg.mxu0
    %v344 = vmax.f32 %v341, 0.0
    %v345 = vpack.c.bf16 %v344, %v344
    %v346 = vld [vmem:[#allocation8] sm:$0xf]
    %v347 = vld [vmem:[#allocation8 + $0x4] sm:$0xf]
    %v348 = vld [vmem:[#allocation8 + $0x8] sm:$0xf]
    %v349 = vld [vmem:[#allocation8 + $0xc] sm:$0xf]
    %v350 = vld [vmem:[#allocation8 + $0x10] sm:$0xf]
    %v351 = vld [vmem:[#allocation8 + $0x14] sm:$0xf]
    %v352 = vld [vmem:[#allocation8 + $0x18] sm:$0xf]
    %v353 = vld [vmem:[#allocation8 + $0x1c] sm:$0xf]
    %v354 = vld [vmem:[#allocation8 + $0x20] sm:$0xf]
    %v355 = vld [vmem:[#allocation8 + $0x24] sm:$0xf]
    %v356 = vld [vmem:[#allocation8 + $0x28] sm:$0xf]
    %v357 = vld [vmem:[#allocation8 + $0x2c] sm:$0xf]
    %v358 = vld [vmem:[#allocation8 + $0x30] sm:$0xf]
    %v359 = vld [vmem:[#allocation8 + $0x34] sm:$0xf]
    %v360 = vld [vmem:[#allocation8 + $0x38] sm:$0xf]
    %v361 = vld [vmem:[#allocation8 + $0x3c] sm:$0xf]
    %v362 = vld [vmem:[%s8] sm:$0x1]
    %v364 = vperm.slane %v362, 0
    %v382 = vunpack.c.l.b16 %v346
    %v383 = vunpack.c.l.b16 %v347
    %v384 = vunpack.c.l.b16 %v348
    %v385 = vunpack.c.l.b16 %v349
    %v386 = vunpack.c.l.b16 %v350
    %v387 = vunpack.c.l.b16 %v351
    %v388 = vunpack.c.l.b16 %v352
    %v389 = vunpack.c.l.b16 %v353
    %v390 = vunpack.c.l.b16 %v354
    %v391 = vunpack.c.l.b16 %v355
    %v392 = vunpack.c.l.b16 %v356
    %v393 = vunpack.c.l.b16 %v357
    %v394 = vunpack.c.l.b16 %v358
    %v395 = vunpack.c.l.b16 %v359
    %v396 = vunpack.c.l.b16 %v360
    %v397 = vunpack.c.l.b16 %v361
    %v398 = vpack.c.b16 %v383, %v382
    %v399 = vpack.c.b16 %v385, %v384
    %v400 = vpack.c.b16 %v387, %v386
    %v401 = vpack.c.b16 %v389, %v388
    %v402 = vpack.c.b16 %v391, %v390
    %v403 = vpack.c.b16 %v393, %v392
    %v404 = vpack.c.b16 %v395, %v394
    %v405 = vpack.c.b16 %v397, %v396
    %414 = vmatpush.bf16.msra.mxu0 %v405
    %415 = vmatpush.bf16.msra.mxu0 %v404
    %416 = vmatpush.bf16.msra.mxu0 %v403
    %417 = vmatpush.bf16.msra.mxu0 %v402
    %418 = vmatpush.bf16.msra.mxu0 %v401
    %419 = vmatpush.bf16.msra.mxu0 %v400
    %420 = vmatpush.bf16.msra.mxu0 %v399
    %421 = vmatpush.bf16.msra.mxu0 %v398
    %422 = vmatmul.bf16.gmra.mxu0 %v345
    %v423 = vpop.f32.mrf.mxu0
    %v424 = vadd.f32 %v364, %v423
    %v425 = vpop.f32.mrf.mxu0
    %426 = vdwg.mxu0
    %v427 = vmax.f32 %v424, 0.0
    %v428 = vpack.c.bf16 %v427, %v427
    %429 = vst [vmem:[#allocation10] sm:$0xf] %v428
    // Predicated region
    $region54: #{_forward.1} parent=1 // pred_check
      _
    $region55: #{_forward.1} parent=1 // pred_check_branch
      %431 = sbr.rel (0) target = $region57
    $region56: #{_forward.1} parent=1 // pred_region
      %433 = vsyncadd [#allocation4], 0
      %s435 = sshll.u32 [#allocation10], 4
      %s436 = int_to_ptr.vmem [resolvable:$true] %s435
      %s437 = sshll.u32 %s9, 4
      %s438 = int_to_ptr.hbm [resolvable:$true] %s437
      %440 = dma.vmem_to_hbm [thread:$0]  %s436, 64, %s438, [#allocation4]
    $region57: #{_forward.1} parent=1 // pred_fallthru
      _
    // Predicated region
    $region58: #{_forward.1} parent=1 // pred_check
      _
    $region59: #{_forward.1} parent=1 // pred_check_branch
      %442 = sbr.rel (0) target = $region61
    $region60: #{_forward.1} parent=1 // pred_region
      %444 = dma.done [#allocation4], 64
    $region61: #{_forward.1} parent=1 // pred_fallthru
      _
    %445 = vsyncpa [#allocation3], 1
    %446 = vsyncpa [#allocation6], 1
    %447 = vsyncpa [#allocation9], 1
    %448 = vsyncpa [#allocation4], 1

</llo_original>
